<compile_context>
chip_gen: v6e
topology: v6e:2x2x1
jax: 0.10.0
libtpu: 0.0.40
codegen_flags: <defaults>
</compile_context>

<pallas_src>
import math
import numpy as np
import jax
import jax.numpy as jnp
from jax.experimental import pallas as pl
from jax.experimental.pallas import tpu as pltpu

LATENT = 8
HID = 32
RESHAPE = (4, 4, 4)  # (C, H, W) after the linear stack, as in the PyTorch .view
CONV1 = dict(cin=4, cout=8, k=4, s=2, p=1)
CONV2 = dict(cin=8, cout=1, k=4, s=2, p=1)
H1 = W1 = 8     # spatial size after conv1
H2 = W2 = 16    # spatial size after conv2
OUT_FLAT = CONV2["cout"] * H2 * W2  # 256  (lane-dense output width)


# ----------------------------- fused Pallas kernel ---------------------------
def _decoder_kernel(x_ref, w1_ref, b1_ref, w2_ref, b2_ref,
                    m1_ref, mb1_ref, m2_ref, mb2_ref, o_ref):
    """sigmoid(relu(relu(relu(x@w1+b1)@w2+b2)@M1+B1)@M2+B2) — all in VMEM/vregs."""
    h = jnp.dot(x_ref[...], w1_ref[...], preferred_element_type=jnp.float32)
    h = jnp.maximum(h + b1_ref[...], 0.0)
    h = jnp.dot(h, w2_ref[...], preferred_element_type=jnp.float32)
    h = jnp.maximum(h + b2_ref[...], 0.0)
    h = jnp.dot(h, m1_ref[...], preferred_element_type=jnp.float32)
    h = jnp.maximum(h + mb1_ref[...], 0.0)
    h = jnp.dot(h, m2_ref[...], preferred_element_type=jnp.float32)
    o_ref[...] = jax.nn.sigmoid(h + mb2_ref[...]).astype(o_ref.dtype)


def _fused_pallas_call(batch):
    vmem = pl.BlockSpec(memory_space=pltpu.MemorySpace.VMEM)
    return pl.pallas_call(
        _decoder_kernel,
        out_shape=jax.ShapeDtypeStruct((batch, OUT_FLAT), jnp.float32),
        in_specs=[vmem] * 9,          # whole arrays, VMEM-resident, gridless
        out_specs=vmem,
    )


def decoder_forward(x, fused):
    """x: (batch, LATENT) -> (batch, 1, 16, 16) Bernoulli probabilities (NCHW)."""
    out2d = _fused_pallas_call(x.shape[0])(
        x,
        fused["w1"], fused["b1"],
        fused["w2"], fused["b2"],
        fused["m1"], fused["mb1"],
        fused["m2"], fused["mb2"],
    )
    # metadata-only reshape to NCHW; flat layout already matches (Cout, Ho, Wo).
    return out2d.reshape(x.shape[0], CONV2["cout"], H2, W2)


# ------------------ conv-transpose -> dense matrix (init-time) ---------------
def _ref_conv_transpose_nchw(x, w_pt, b, stride, padding):
    """Reference PyTorch-semantics ConvTranspose2d, NCHW, w_pt = (Cin,Cout,K,K)."""
    N, Cin, H, W = x.shape
    _, Cout, K, _ = w_pt.shape
    Ho = (H - 1) * stride - 2 * padding + K
    Wo = (W - 1) * stride - 2 * padding + K
    full = jnp.zeros((N, Cout, Ho + 2 * padding, Wo + 2 * padding), x.dtype)
    contrib = jnp.einsum("nchw,cokl->nohwkl", x, w_pt)
    for ky in range(K):
        for kx in range(K):
            full = full.at[:, :, ky:ky + (H - 1) * stride + 1:stride,
                                 kx:kx + (W - 1) * stride + 1:stride].add(contrib[..., ky, kx])
    out = full[:, :, padding:padding + Ho, padding:padding + Wo]
    return out + b.reshape(1, Cout, 1, 1)


def _conv_transpose_as_dense(w_pt, b, stride, padding, H, W):
    """Lower ConvTranspose2d over a fixed (H, W) input to (dense_matrix, flat_bias).

    dense_matrix: (Cin*H*W, Cout*Ho*Wo) acting on NCHW-flattened rows.
    flat_bias:    (1, Cout*Ho*Wo)       per-channel bias broadcast over Ho*Wo.
    """
    Cin, Cout, K, _ = w_pt.shape
    Ho = (H - 1) * stride - 2 * padding + K
    Wo = (W - 1) * stride - 2 * padding + K
    basis = jnp.eye(Cin * H * W, dtype=jnp.float32).reshape(Cin * H * W, Cin, H, W)
    resp = _ref_conv_transpose_nchw(basis, w_pt, jnp.zeros((Cout,), jnp.float32),
                                    stride, padding)
    dense = resp.reshape(Cin * H * W, Cout * Ho * Wo)
    flat_bias = jnp.repeat(b, Ho * Wo).reshape(1, Cout * Ho * Wo)
    return dense, flat_bias


def lower_params(params):
    """One-time lowering: conv weights -> dense matrices, biases -> (1, N) rows."""
    C, H, W = RESHAPE
    m1, mb1 = _conv_transpose_as_dense(params["cw1"], params["cb1"],
                                       CONV1["s"], CONV1["p"], H, W)
    m2, mb2 = _conv_transpose_as_dense(params["cw2"], params["cb2"],
                                       CONV2["s"], CONV2["p"], H1, W1)
    fused = {
        "w1": params["w1"], "b1": params["b1"].reshape(1, -1),
        "w2": params["w2"], "b2": params["b2"].reshape(1, -1),
        "m1": m1, "mb1": mb1,
        "m2": m2, "mb2": mb2,
    }
    return jax.tree_util.tree_map(jax.block_until_ready, fused)


# ------------------------- deterministic parameters --------------------------
def init_params(key):
    ks = jax.random.split(key, 8)

    def u(k, shape, fan_in):
        bound = 1.0 / math.sqrt(fan_in)
        return jax.random.uniform(k, shape, jnp.float32, -bound, bound)

    C, H, W = RESHAPE
    return {
        # linear weights stored as (in, out)
        "w1": u(ks[0], (LATENT, HID), LATENT),
        "b1": u(ks[1], (HID,), LATENT),
        "w2": u(ks[2], (HID, C * H * W), HID),
        "b2": u(ks[3], (C * H * W,), HID),
        # ConvTranspose2d weights in PyTorch layout (Cin, Cout, K, K)
        "cw1": u(ks[4], (CONV1["cin"], CONV1["cout"], CONV1["k"], CONV1["k"]),
                 CONV1["cin"] * CONV1["k"] ** 2),
        "cb1": u(ks[5], (CONV1["cout"],), CONV1["cin"] * CONV1["k"] ** 2),
        "cw2": u(ks[6], (CONV2["cin"], CONV2["cout"], CONV2["k"], CONV2["k"]),
                 CONV2["cin"] * CONV2["k"] ** 2),
        "cb2": u(ks[7], (CONV2["cout"],), CONV2["cin"] * CONV2["k"] ** 2),
    }


# --------------------------- pure-JAX reference ------------------------------
def ref_forward(x, params):
    h = jnp.maximum(x @ params["w1"] + params["b1"], 0.0)
    h = jnp.maximum(h @ params["w2"] + params["b2"], 0.0)
    C, H, W = RESHAPE
    h = h.reshape(-1, C, H, W)
    h = jnp.maximum(_ref_conv_transpose_nchw(h, params["cw1"], params["cb1"],
                                             CONV1["s"], CONV1["p"]), 0.0)
    h = jax.nn.sigmoid(_ref_conv_transpose_nchw(h, params["cw2"], params["cb2"],
                                                CONV2["s"], CONV2["p"]))
    return h


if __name__ == "__main__":
    key = jax.random.PRNGKey(0)
    pkey, xkey = jax.random.split(key)
    params = init_params(pkey)
    fused = lower_params(params)          # conv->dense lowering done ONCE, off the hot path
    x = jax.random.normal(xkey, (2, LATENT), jnp.float32)

    fwd = jax.jit(decoder_forward)
    out = jax.block_until_ready(fwd(x, fused))
    ref = jax.block_until_ready(ref_forward(x, params))

    assert out.shape == (2, CONV2["cout"], H2, W2), out.shape
    np.testing.assert_allclose(np.asarray(out), np.asarray(ref), rtol=1e-4, atol=1e-4)
    # TODO(synk): torch.distributions.Bernoulli has no Pallas equivalent; the
    # kernel returns the Bernoulli probability tensor (post-sigmoid) instead.
    print("KERNEL_OK")
</pallas_src>

<mosaic_0001>
module attributes {stable_mosaic.version = 11 : i64} {
  func.func @_decoder_kernel(%arg0: memref<2x8xf32, #tpu.memory_space<vmem>>, %arg1: memref<8x32xf32, #tpu.memory_space<vmem>>, %arg2: memref<1x32xf32, #tpu.memory_space<vmem>>, %arg3: memref<32x64xf32, #tpu.memory_space<vmem>>, %arg4: memref<1x64xf32, #tpu.memory_space<vmem>>, %arg5: memref<64x512xf32, #tpu.memory_space<vmem>>, %arg6: memref<1x512xf32, #tpu.memory_space<vmem>>, %arg7: memref<512x256xf32, #tpu.memory_space<vmem>>, %arg8: memref<1x256xf32, #tpu.memory_space<vmem>>, %arg9: memref<2x256xf32, #tpu.memory_space<vmem>>) attributes {dimension_semantics = [], scalar_prefetch = 0 : i64, scratch_operands = 0 : i64, tpu.core_type = #tpu.core_type<tc>} {
    %c0 = arith.constant 0 : index
    %c0_0 = arith.constant 0 : index
    %0 = vector.load %arg0[%c0, %c0_0] : memref<2x8xf32, #tpu.memory_space<vmem>>, vector<2x8xf32>
    %c0_1 = arith.constant 0 : index
    %c0_2 = arith.constant 0 : index
    %1 = vector.load %arg1[%c0_1, %c0_2] : memref<8x32xf32, #tpu.memory_space<vmem>>, vector<8x32xf32>
    %cst = arith.constant dense<0.000000e+00> : vector<2x32xf32>
    %2 = tpu.matmul %0, %1, %cst {dimension_numbers = #tpu.dot_dimension_numbers<[1], [0], [0], [1], [0, 0, 1, 1], [], []>} : vector<2x8xf32>, vector<8x32xf32>, vector<2x32xf32> -> vector<2x32xf32>
    %c0_3 = arith.constant 0 : index
    %c0_4 = arith.constant 0 : index
    %3 = vector.load %arg2[%c0_3, %c0_4] : memref<1x32xf32, #tpu.memory_space<vmem>>, vector<1x32xf32>
    %4 = vector.broadcast %3 : vector<1x32xf32> to vector<2x32xf32>
    %5 = arith.addf %2, %4 : vector<2x32xf32>
    %cst_5 = arith.constant 0.000000e+00 : f32
    %6 = vector.broadcast %cst_5 : f32 to vector<2x32xf32>
    %7 = arith.maximumf %5, %6 : vector<2x32xf32>
    %c0_6 = arith.constant 0 : index
    %c0_7 = arith.constant 0 : index
    %8 = vector.load %arg3[%c0_6, %c0_7] : memref<32x64xf32, #tpu.memory_space<vmem>>, vector<32x64xf32>
    %cst_8 = arith.constant dense<0.000000e+00> : vector<2x64xf32>
    %9 = tpu.matmul %7, %8, %cst_8 {dimension_numbers = #tpu.dot_dimension_numbers<[1], [0], [0], [1], [0, 0, 1, 1], [], []>} : vector<2x32xf32>, vector<32x64xf32>, vector<2x64xf32> -> vector<2x64xf32>
    %c0_9 = arith.constant 0 : index
    %c0_10 = arith.constant 0 : index
    %10 = vector.load %arg4[%c0_9, %c0_10] : memref<1x64xf32, #tpu.memory_space<vmem>>, vector<1x64xf32>
    %11 = vector.broadcast %10 : vector<1x64xf32> to vector<2x64xf32>
    %12 = arith.addf %9, %11 : vector<2x64xf32>
    %cst_11 = arith.constant 0.000000e+00 : f32
    %13 = vector.broadcast %cst_11 : f32 to vector<2x64xf32>
    %14 = arith.maximumf %12, %13 : vector<2x64xf32>
    %c0_12 = arith.constant 0 : index
    %c0_13 = arith.constant 0 : index
    %15 = vector.load %arg5[%c0_12, %c0_13] : memref<64x512xf32, #tpu.memory_space<vmem>>, vector<64x512xf32>
    %cst_14 = arith.constant dense<0.000000e+00> : vector<2x512xf32>
    %16 = tpu.matmul %14, %15, %cst_14 {dimension_numbers = #tpu.dot_dimension_numbers<[1], [0], [0], [1], [0, 0, 1, 1], [], []>} : vector<2x64xf32>, vector<64x512xf32>, vector<2x512xf32> -> vector<2x512xf32>
    %c0_15 = arith.constant 0 : index
    %c0_16 = arith.constant 0 : index
    %17 = vector.load %arg6[%c0_15, %c0_16] : memref<1x512xf32, #tpu.memory_space<vmem>>, vector<1x512xf32>
    %18 = vector.broadcast %17 : vector<1x512xf32> to vector<2x512xf32>
    %19 = arith.addf %16, %18 : vector<2x512xf32>
    %cst_17 = arith.constant 0.000000e+00 : f32
    %20 = vector.broadcast %cst_17 : f32 to vector<2x512xf32>
    %21 = arith.maximumf %19, %20 : vector<2x512xf32>
    %c0_18 = arith.constant 0 : index
    %c0_19 = arith.constant 0 : index
    %22 = vector.load %arg7[%c0_18, %c0_19] : memref<512x256xf32, #tpu.memory_space<vmem>>, vector<512x256xf32>
    %cst_20 = arith.constant dense<0.000000e+00> : vector<2x256xf32>
    %23 = tpu.matmul %21, %22, %cst_20 {dimension_numbers = #tpu.dot_dimension_numbers<[1], [0], [0], [1], [0, 0, 1, 1], [], []>} : vector<2x512xf32>, vector<512x256xf32>, vector<2x256xf32> -> vector<2x256xf32>
    %c0_21 = arith.constant 0 : index
    %c0_22 = arith.constant 0 : index
    %24 = vector.load %arg8[%c0_21, %c0_22] : memref<1x256xf32, #tpu.memory_space<vmem>>, vector<1x256xf32>
    %25 = vector.broadcast %24 : vector<1x256xf32> to vector<2x256xf32>
    %26 = arith.addf %23, %25 : vector<2x256xf32>
    %27 = arith.negf %26 : vector<2x256xf32>
    %28 = math.exp %27 : vector<2x256xf32>
    %cst_23 = arith.constant 1.000000e+00 : f32
    %29 = vector.broadcast %cst_23 : f32 to vector<2x256xf32>
    %30 = arith.addf %29, %28 : vector<2x256xf32>
    %31 = arith.divf %29, %30 : vector<2x256xf32>
    %c0_24 = arith.constant 0 : index
    %c0_25 = arith.constant 0 : index
    %32 = vector.load %arg9[%c0_24, %c0_25] : memref<2x256xf32, #tpu.memory_space<vmem>>, vector<2x256xf32>
    tpu.vector_store %arg9[%c0_24, %c0_25], %31 {strides = array<i32>} : memref<2x256xf32, #tpu.memory_space<vmem>>, vector<2x256xf32>,
    return
  }
}

</mosaic_0001>

<llo_original>
// kernel: decoder_forward.1
$region0: #{decoder_forward.1}
  #allocation0 [shape = 'u32[]', space=smem, size = 0x4, offset = 0x4, fixed_abs, tag = 'smem constant byte address 0x4 - core index']
  #allocation1 [shape = 'u32[144,128]{1,0:T(1,128)}', space=vmem, size = 0x12000, scoped, tag = 'internal scratch']
  %s0 = inlined_call_operand.hbm [shape: f32[2,8], index: 0, kind: input, shape index: {}]
  %s1 = inlined_call_operand.vmem [shape: f32[8,32], index: 1, kind: input, shape index: {}]
  %s2 = inlined_call_operand.hbm [shape: f32[1,32], index: 2, kind: input, shape index: {}]
  %s3 = inlined_call_operand.hbm [shape: f32[32,64], index: 3, kind: input, shape index: {}]
  %s4 = inlined_call_operand.hbm [shape: f32[1,64], index: 4, kind: input, shape index: {}]
  %s5 = inlined_call_operand.hbm [shape: f32[64,512], index: 5, kind: input, shape index: {}]
  %s6 = inlined_call_operand.vmem [shape: f32[1,512], index: 6, kind: input, shape index: {}]
  %s7 = inlined_call_operand.hbm [shape: f32[512,256], index: 7, kind: input, shape index: {}]
  %s8 = inlined_call_operand.hbm [shape: f32[1,256], index: 8, kind: input, shape index: {}]
  %s9 = inlined_call_operand.vmem [shape: f32[2,256], index: 9, kind: output, shape index: {}]
  %s10 = sld [smem:[#allocation0]]
  $region74: #{decoder_forward.1} parent=0
    _
  %s12 = ssub.s32 1, %s10
  %s13 = scalar_select 0, %s12, %s10
  $region1: #{decoder_forward.1} parent=0
    #allocation2 [shape = 'u8[1024]{0}', space=vmem, size = 0x400, scoped, tag = 'input window, operand 0, single buffered']
    #allocation3 [shape = 's32[1]{0}', space=sflag, size = 0x4, scoped, tag = 'scoped memory for decoder_forward.1']
    #allocation4 [shape = 'u8[512]{0}', space=vmem, size = 0x400, scoped, tag = 'input window, operand 2, single buffered']
    #allocation5 [shape = 's32[1]{0}', space=sflag, size = 0x4, scoped, tag = 'scoped memory for decoder_forward.1']
    #allocation6 [shape = 'u8[16384]{0}', space=vmem, size = 0x4000, scoped, tag = 'input window, operand 3, single buffered']
    #allocation7 [shape = 'u8[512]{0}', space=vmem, size = 0x400, scoped, tag = 'input window, operand 4, single buffered']
    #allocation8 [shape = 's32[1]{0}', space=sflag, size = 0x4, scoped, tag = 'scoped memory for decoder_forward.1']
    #allocation9 [shape = 'u8[131072]{0}', space=vmem, size = 0x20000, scoped, tag = 'input window, operand 5, single buffered']
    #allocation10 [shape = 'u8[524288]{0}', space=vmem, size = 0x80000, scoped, tag = 'input window, operand 7, single buffered']
    #allocation11 [shape = 's32[1]{0}', space=sflag, size = 0x4, scoped, tag = 'scoped memory for decoder_forward.1']
    #allocation12 [shape = 'u8[1024]{0}', space=vmem, size = 0x400, scoped, tag = 'input window, operand 8, single buffered']
    %14 = vsyncpa [#allocation3], 0
    %15 = vsyncpa [#allocation5], 0
    %16 = vsyncpa [#allocation8], 0
    %17 = vsyncpa [#allocation11], 0
    // Predicated region
    $region2: #{decoder_forward.1} parent=1 // pred_check
      _
    $region3: #{decoder_forward.1} parent=1 // pred_check_branch
      %19 = sbr.rel (0) target = $region5
    $region4: #{decoder_forward.1} parent=1 // pred_region
      %s21 = ssub.s32 32, 32
      %22 = vsyncadd [#allocation3], %s21
      %s24 = sshll.u32 [#allocation2], 4
      %s25 = int_to_ptr.vmem [resolvable:$true] %s24
      %27 = dma.hbm_to_vmem [thread:$0]  %s0, 32, %s25, [#allocation3]
    $region5: #{decoder_forward.1} parent=1 // pred_fallthru
      _
    // Predicated region
    $region6: #{decoder_forward.1} parent=1 // pred_check
      _
    $region7: #{decoder_forward.1} parent=1 // pred_check_branch
      %29 = sbr.rel (0) target = $region9
    $region8: #{decoder_forward.1} parent=1 // pred_region
      _
    $region9: #{decoder_forward.1} parent=1 // pred_fallthru
      _
    // Predicated region
    $region10: #{decoder_forward.1} parent=1 // pred_check
      _
    $region11: #{decoder_forward.1} parent=1 // pred_check_branch
      %31 = sbr.rel (0) target = $region13
    $region12: #{decoder_forward.1} parent=1 // pred_region
      %s33 = ssub.s32 16, 16
      %34 = vsyncadd [#allocation5], %s33
      %s36 = sshll.u32 [#allocation4], 4
      %s37 = int_to_ptr.vmem [resolvable:$true] %s36
      %39 = dma.hbm_to_vmem [thread:$0]  %s2, 16, %s37, [#allocation5]
    $region13: #{decoder_forward.1} parent=1 // pred_fallthru
      _
    // Predicated region
    $region14: #{decoder_forward.1} parent=1 // pred_check
      _
    $region15: #{decoder_forward.1} parent=1 // pred_check_branch
      %41 = sbr.rel (0) target = $region17
    $region16: #{decoder_forward.1} parent=1 // pred_region
      %s43 = ssub.s32 512, 512
      %44 = vsyncadd [#allocation5], %s43
      %s45 = sshll.u32 [#allocation6], 4
      %s46 = int_to_ptr.vmem [resolvable:$true] %s45
      %51 = dma.hbm_to_vmem [thread:$0]  %s3, 512, %s46, [#allocation5], 128, 128, 8
    $region17: #{decoder_forward.1} parent=1 // pred_fallthru
      _
    // Predicated region
    $region18: #{decoder_forward.1} parent=1 // pred_check
      _
    $region19: #{decoder_forward.1} parent=1 // pred_check_branch
      %53 = sbr.rel (0) target = $region21
    $region20: #{decoder_forward.1} parent=1 // pred_region
      %s55 = ssub.s32 16, 16
      %56 = vsyncadd [#allocation8], %s55
      %s58 = sshll.u32 [#allocation7], 4
      %s59 = int_to_ptr.vmem [resolvable:$true] %s58
      %61 = dma.hbm_to_vmem [thread:$0]  %s4, 16, %s59, [#allocation8]
    $region21: #{decoder_forward.1} parent=1 // pred_fallthru
      _
    // Predicated region
    $region22: #{decoder_forward.1} parent=1 // pred_check
      _
    $region23: #{decoder_forward.1} parent=1 // pred_check_branch
      %63 = sbr.rel (0) target = $region25
    $region24: #{decoder_forward.1} parent=1 // pred_region
      %s65 = ssub.s32 4096, 4096
      %66 = vsyncadd [#allocation8], %s65
      %s67 = sshll.u32 [#allocation9], 4
      %s68 = int_to_ptr.vmem [resolvable:$true] %s67
      %73 = dma.hbm_to_vmem [thread:$0]  %s5, 4096, %s68, [#allocation8], 512, 512, 32
    $region25: #{decoder_forward.1} parent=1 // pred_fallthru
      _
    // Predicated region
    $region26: #{decoder_forward.1} parent=1 // pred_check
      _
    $region27: #{decoder_forward.1} parent=1 // pred_check_branch
      %75 = sbr.rel (0) target = $region29
    $region28: #{decoder_forward.1} parent=1 // pred_region
      _
    $region29: #{decoder_forward.1} parent=1 // pred_fallthru
      _
    // Predicated region
    $region30: #{decoder_forward.1} parent=1 // pred_check
      _
    $region31: #{decoder_forward.1} parent=1 // pred_check_branch
      %77 = sbr.rel (0) target = $region33
    $region32: #{decoder_forward.1} parent=1 // pred_region
      %s79 = ssub.s32 16384, 16384
      %80 = vsyncadd [#allocation11], %s79
      %s81 = sshll.u32 [#allocation10], 4
      %s82 = int_to_ptr.vmem [resolvable:$true] %s81
      %87 = dma.hbm_to_vmem [thread:$0]  %s7, 16384, %s82, [#allocation11], 256, 256, 16
    $region33: #{decoder_forward.1} parent=1 // pred_fallthru
      _
    // Predicated region
    $region34: #{decoder_forward.1} parent=1 // pred_check
      _
    $region35: #{decoder_forward.1} parent=1 // pred_check_branch
      %89 = sbr.rel (0) target = $region37
    $region36: #{decoder_forward.1} parent=1 // pred_region
      %s91 = ssub.s32 32, 32
      %92 = vsyncadd [#allocation11], %s91
      %s94 = sshll.u32 [#allocation12], 4
      %s95 = int_to_ptr.vmem [resolvable:$true] %s94
      %97 = dma.hbm_to_vmem [thread:$0]  %s8, 32, %s95, [#allocation11]
    $region37: #{decoder_forward.1} parent=1 // pred_fallthru
      _
    // Predicated region
    $region38: #{decoder_forward.1} parent=1 // pred_check
      _
    $region39: #{decoder_forward.1} parent=1 // pred_check_branch
      %99 = sbr.rel (0) target = $region41
    $region40: #{decoder_forward.1} parent=1 // pred_region
      %100 = dma.done [#allocation3], 32
    $region41: #{decoder_forward.1} parent=1 // pred_fallthru
      _
    // Predicated region
    $region42: #{decoder_forward.1} parent=1 // pred_check
      _
    $region43: #{decoder_forward.1} parent=1 // pred_check_branch
      %102 = sbr.rel (0) target = $region45
    $region44: #{decoder_forward.1} parent=1 // pred_region
      %103 = dma.done [#allocation5], 16
    $region45: #{decoder_forward.1} parent=1 // pred_fallthru
      _
    // Predicated region
    $region46: #{decoder_forward.1} parent=1 // pred_check
      _
    $region47: #{decoder_forward.1} parent=1 // pred_check_branch
      %105 = sbr.rel (0) target = $region49
    $region48: #{decoder_forward.1} parent=1 // pred_region
      %106 = dma.done [#allocation5], 512
    $region49: #{decoder_forward.1} parent=1 // pred_fallthru
      _
    // Predicated region
    $region50: #{decoder_forward.1} parent=1 // pred_check
      _
    $region51: #{decoder_forward.1} parent=1 // pred_check_branch
      %108 = sbr.rel (0) target = $region53
    $region52: #{decoder_forward.1} parent=1 // pred_region
      %109 = dma.done [#allocation8], 16
    $region53: #{decoder_forward.1} parent=1 // pred_fallthru
      _
    // Predicated region
    $region54: #{decoder_forward.1} parent=1 // pred_check
      _
    $region55: #{decoder_forward.1} parent=1 // pred_check_branch
      %111 = sbr.rel (0) target = $region57
    $region56: #{decoder_forward.1} parent=1 // pred_region
      %112 = dma.done [#allocation8], 4096
    $region57: #{decoder_forward.1} parent=1 // pred_fallthru
      _
    // Predicated region
    $region58: #{decoder_forward.1} parent=1 // pred_check
      _
    $region59: #{decoder_forward.1} parent=1 // pred_check_branch
      %114 = sbr.rel (0) target = $region61
    $region60: #{decoder_forward.1} parent=1 // pred_region
      %115 = dma.done [#allocation11], 16384
    $region61: #{decoder_forward.1} parent=1 // pred_fallthru
      _
    // Predicated region
    $region62: #{decoder_forward.1} parent=1 // pred_check
      _
    $region63: #{decoder_forward.1} parent=1 // pred_check_branch
      %117 = sbr.rel (0) target = $region65
    $region64: #{decoder_forward.1} parent=1 // pred_region
      %118 = dma.done [#allocation11], 32
    $region65: #{decoder_forward.1} parent=1 // pred_fallthru
      _
    %v119 = vld [vmem:[#allocation2] sm:$0x3]
    %v120 = vld [vmem:[%s1] sm:$0xff]
    %v121 = vld [vmem:[#allocation4] sm:$0x1]
    %v123 = vlaneseq
    %v124 = vshrl.u32 %v123, 7
    %v125 = vsub.s32 0, %v124
    %v126 = vrot.slane %v121, %v125
    %vm128 = vcmask 64512
    %v130 = vsel %vm128, %v119, 0
    %132 = vmatprep.subr.mxu0 0.0
    %133 = vmatpush1.msra.mxu0 0.0
    %134 = vmatprep.subr.mxu0 0.0
    %135 = vmatpush1.msra.mxu0 0.0
    %136 = vmatprep.subr.mxu0 0.0
    %137 = vmatpush1.msra.mxu0 0.0
    %138 = vmatprep.subr.mxu0 0.0
    %139 = vmatpush1.msra.mxu0 0.0
    %140 = vmatprep.subr.mxu0 0.0
    %141 = vmatpush1.msra.mxu0 0.0
    %142 = vmatprep.subr.mxu0 0.0
    %143 = vmatpush1.msra.mxu0 0.0
    %144 = vmatprep.subr.mxu0 0.0
    %145 = vmatpush1.msra.mxu0 0.0
    %146 = vmatprep.subr.mxu0 0.0
    %147 = vmatpush1.msra.mxu0 0.0
    %148 = vmatprep.subr.mxu0 0.0
    %149 = vmatpush1.msra.mxu0 0.0
    %150 = vmatprep.subr.mxu0 0.0
    %151 = vmatpush1.msra.mxu0 0.0
    %152 = vmatprep.subr.mxu0 0.0
    %153 = vmatpush1.msra.mxu0 0.0
    %154 = vmatprep.subr.mxu0 0.0
    %155 = vmatpush1.msra.mxu0 0.0
    %156 = vmatprep.subr.mxu0 0.0
    %157 = vmatpush1.msra.mxu0 0.0
    %158 = vmatprep.subr.mxu0 0.0
    %159 = vmatpush1.msra.mxu0 0.0
    %160 = vmatprep.subr.mxu0 0.0
    %161 = vmatpush1.msra.mxu0 0.0
    %162 = vmatprep.subr.mxu0 0.0
    %163 = vmatpush1.msra.mxu0 %v120
    %164 = vmatprep.subr.mxu0 0.0
    %165 = vmatpush2.msra.mxu0 0.0
    %166 = vmatprep.subr.mxu0 0.0
    %167 = vmatpush2.msra.mxu0 0.0
    %168 = vmatprep.subr.mxu0 0.0
    %169 = vmatpush2.msra.mxu0 0.0
    %170 = vmatprep.subr.mxu0 0.0
    %171 = vmatpush2.msra.mxu0 0.0
    %172 = vmatprep.subr.mxu0 0.0
    %173 = vmatpush2.msra.mxu0 0.0
    %174 = vmatprep.subr.mxu0 0.0
    %175 = vmatpush2.msra.mxu0 0.0
    %176 = vmatprep.subr.mxu0 0.0
    %177 = vmatpush2.msra.mxu0 0.0
    %178 = vmatprep.subr.mxu0 0.0
    %179 = vmatpush2.msra.mxu0 0.0
    %180 = vmatprep.subr.mxu0 0.0
    %181 = vmatpush2.msra.mxu0 0.0
    %182 = vmatprep.subr.mxu0 0.0
    %183 = vmatpush2.msra.mxu0 0.0
    %184 = vmatprep.subr.mxu0 0.0
    %185 = vmatpush2.msra.mxu0 0.0
    %186 = vmatprep.subr.mxu0 0.0
    %187 = vmatpush2.msra.mxu0 0.0
    %188 = vmatprep.subr.mxu0 0.0
    %189 = vmatpush2.msra.mxu0 0.0
    %190 = vmatprep.subr.mxu0 0.0
    %191 = vmatpush2.msra.mxu0 0.0
    %192 = vmatprep.subr.mxu0 0.0
    %193 = vmatpush2.msra.mxu0 0.0
    %194 = vmatprep.subr.mxu0 0.0
    %195 = vmatpush2.msra.mxu0 0.0
    %196 = vmatprep.mubr.f32.mxu0 0.0
    %197 = vmatmul.mubr.f32.gmra.mxu0 %v130
    %v198 = vpop.f32.mrf.mxu0
    %v199 = vadd.f32 %v126, %v198
    %v200 = vpop.f32.mrf.mxu0
    %201 = vdwg.mxu0
    %v202 = vmax.f32 %v199, 0.0
    %v203 = vld [vmem:[#allocation6] sm:$0xff]
    %v204 = vld [vmem:[#allocation6 + $0x8] sm:$0xff]
    %v205 = vld [vmem:[#allocation6 + $0x10] sm:$0xff]
    %v206 = vld [vmem:[#allocation6 + $0x18] sm:$0xff]
    %v207 = vld [vmem:[#allocation7] sm:$0x1]
    %v209 = vlaneseq
    %v210 = vshrl.u32 %v209, 7
    %v211 = vsub.s32 0, %v210
    %v212 = vrot.slane %v207, %v211
    %vm214 = vcmask 261120
    %v216 = vsel %vm214, %v202, 0
    %218 = vmatprep.subr.mxu0 0.0
    %219 = vmatpush1.msra.mxu0 0.0
    %220 = vmatprep.subr.mxu0 0.0
    %221 = vmatpush1.msra.mxu0 0.0
    %222 = vmatprep.subr.mxu0 0.0
    %223 = vmatpush1.msra.mxu0 0.0
    %224 = vmatprep.subr.mxu0 0.0
    %225 = vmatpush1.msra.mxu0 0.0
    %226 = vmatprep.subr.mxu0 0.0
    %227 = vmatpush1.msra.mxu0 0.0
    %228 = vmatprep.subr.mxu0 0.0
    %229 = vmatpush1.msra.mxu0 0.0
    %230 = vmatprep.subr.mxu0 0.0
    %231 = vmatpush1.msra.mxu0 0.0
    %232 = vmatprep.subr.mxu0 0.0
    %233 = vmatpush1.msra.mxu0 0.0
    %234 = vmatprep.subr.mxu0 0.0
    %235 = vmatpush1.msra.mxu0 0.0
    %236 = vmatprep.subr.mxu0 0.0
    %237 = vmatpush1.msra.mxu0 0.0
    %238 = vmatprep.subr.mxu0 0.0
    %239 = vmatpush1.msra.mxu0 0.0
    %240 = vmatprep.subr.mxu0 0.0
    %241 = vmatpush1.msra.mxu0 0.0
    %242 = vmatprep.subr.mxu0 0.0
    %243 = vmatpush1.msra.mxu0 %v206
    %244 = vmatprep.subr.mxu0 0.0
    %245 = vmatpush1.msra.mxu0 %v205
    %246 = vmatprep.subr.mxu0 0.0
    %247 = vmatpush1.msra.mxu0 %v204
    %248 = vmatprep.subr.mxu0 0.0
    %249 = vmatpush1.msra.mxu0 %v203
    %250 = vmatprep.subr.mxu0 0.0
    %251 = vmatpush2.msra.mxu0 0.0
    %252 = vmatprep.subr.mxu0 0.0
    %253 = vmatpush2.msra.mxu0 0.0
    %254 = vmatprep.subr.mxu0 0.0
    %255 = vmatpush2.msra.mxu0 0.0
    %256 = vmatprep.subr.mxu0 0.0
    %257 = vmatpush2.msra.mxu0 0.0
    %258 = vmatprep.subr.mxu0 0.0
    %259 = vmatpush2.msra.mxu0 0.0
    %260 = vmatprep.subr.mxu0 0.0
    %261 = vmatpush2.msra.mxu0 0.0
    %262 = vmatprep.subr.mxu0 0.0
    %263 = vmatpush2.msra.mxu0 0.0
    %264 = vmatprep.subr.mxu0 0.0
    %265 = vmatpush2.msra.mxu0 0.0
    %266 = vmatprep.subr.mxu0 0.0
    %267 = vmatpush2.msra.mxu0 0.0
    %268 = vmatprep.subr.mxu0 0.0
    %269 = vmatpush2.msra.mxu0 0.0
    %270 = vmatprep.subr.mxu0 0.0
    %271 = vmatpush2.msra.mxu0 0.0
    %272 = vmatprep.subr.mxu0 0.0
    %273 = vmatpush2.msra.mxu0 0.0
    %274 = vmatprep.subr.mxu0 0.0
    %275 = vmatpush2.msra.mxu0 0.0
    %276 = vmatprep.subr.mxu0 0.0
    %277 = vmatpush2.msra.mxu0 0.0
    %278 = vmatprep.subr.mxu0 0.0
    %279 = vmatpush2.msra.mxu0 0.0
    %280 = vmatprep.subr.mxu0 0.0
    %281 = vmatpush2.msra.mxu0 0.0
    %282 = vmatprep.mubr.f32.mxu0 0.0
    %283 = vmatmul.mubr.f32.gmra.mxu0 %v216
    %v284 = vpop.f32.mrf.mxu0
    %v285 = vadd.f32 %v212, %v284
    %v286 = vpop.f32.mrf.mxu0
    %287 = vdwg.mxu0
    %v288 = vmax.f32 %v285, 0.0
    %v289 = vld [vmem:[#allocation9] sm:$0xff]
    %v290 = vld [vmem:[#allocation9 + $0x8] sm:$0xff]
    %v291 = vld [vmem:[#allocation9 + $0x10] sm:$0xff]
    %v292 = vld [vmem:[#allocation9 + $0x18] sm:$0xff]
    %v293 = vld [vmem:[#allocation9 + $0x20] sm:$0xff]
    %v294 = vld [vmem:[#allocation9 + $0x28] sm:$0xff]
    %v295 = vld [vmem:[#allocation9 + $0x30] sm:$0xff]
    %v296 = vld [vmem:[#allocation9 + $0x38] sm:$0xff]
    %v297 = vld [vmem:[#allocation9 + $0x40] sm:$0xff]
    %v298 = vld [vmem:[#allocation9 + $0x48] sm:$0xff]
    %v299 = vld [vmem:[#allocation9 + $0x50] sm:$0xff]
    %v300 = vld [vmem:[#allocation9 + $0x58] sm:$0xff]
    %v301 = vld [vmem:[#allocation9 + $0x60] sm:$0xff]
    %v302 = vld [vmem:[#allocation9 + $0x68] sm:$0xff]
    %v303 = vld [vmem:[#allocation9 + $0x70] sm:$0xff]
    %v304 = vld [vmem:[#allocation9 + $0x78] sm:$0xff]
    %v305 = vld [vmem:[#allocation9 + $0x80] sm:$0xff]
    %v306 = vld [vmem:[#allocation9 + $0x88] sm:$0xff]
    %v307 = vld [vmem:[#allocation9 + $0x90] sm:$0xff]
    %v308 = vld [vmem:[#allocation9 + $0x98] sm:$0xff]
    %v309 = vld [vmem:[#allocation9 + $0xa0] sm:$0xff]
    %v310 = vld [vmem:[#allocation9 + $0xa8] sm:$0xff]
    %v311 = vld [vmem:[#allocation9 + $0xb0] sm:$0xff]
    %v312 = vld [vmem:[#allocation9 + $0xb8] sm:$0xff]
    %v313 = vld [vmem:[#allocation9 + $0xc0] sm:$0xff]
    %v314 = vld [vmem:[#allocation9 + $0xc8] sm:$0xff]
    %v315 = vld [vmem:[#allocation9 + $0xd0] sm:$0xff]
    %v316 = vld [vmem:[#allocation9 + $0xd8] sm:$0xff]
    %v317 = vld [vmem:[#allocation9 + $0xe0] sm:$0xff]
    %v318 = vld [vmem:[#allocation9 + $0xe8] sm:$0xff]
    %v319 = vld [vmem:[#allocation9 + $0xf0] sm:$0xff]
    %v320 = vld [vmem:[#allocation9 + $0xf8] sm:$0xff]
    %v321 = vld [vmem:[%s6] sm:$0xf]
    %v323 = vlaneseq
    %v324 = vshrl.u32 %v323, 7
    %v325 = vsub.s32 0, %v324
    %v326 = vrot.slane %v321, %v325
    %v327 = vlaneseq
    %v328 = vshrl.u32 %v327, 7
    %v329 = vsub.s32 1, %v328
    %v330 = vrot.slane %v321, %v329
    %v331 = vlaneseq
    %v332 = vshrl.u32 %v331, 7
    %v333 = vsub.s32 2, %v332
    %v334 = vrot.slane %v321, %v333
    %v335 = vlaneseq
    %v336 = vshrl.u32 %v335, 7
    %v337 = vsub.s32 3, %v336
    %v338 = vrot.slane %v321, %v337
    %vm343 = vcmask 523264
    %v345 = vsel %vm343, %v288, 0
    %347 = vmatprep.subr.mxu0 0.0
    %348 = vmatpush1.msra.mxu0 0.0
    %349 = vmatprep.subr.mxu0 0.0
    %350 = vmatpush1.msra.mxu0 0.0
    %351 = vmatprep.subr.mxu0 0.0
    %352 = vmatpush1.msra.mxu0 0.0
    %353 = vmatprep.subr.mxu0 0.0
    %354 = vmatpush1.msra.mxu0 0.0
    %355 = vmatprep.subr.mxu0 0.0
    %356 = vmatpush1.msra.mxu0 0.0
    %357 = vmatprep.subr.mxu0 0.0
    %358 = vmatpush1.msra.mxu0 0.0
    %359 = vmatprep.subr.mxu0 0.0
    %360 = vmatpush1.msra.mxu0 0.0
    %361 = vmatprep.subr.mxu0 0.0
    %362 = vmatpush1.msra.mxu0 0.0
    %363 = vmatprep.subr.mxu0 %v318
    %364 = vmatpush1.msra.mxu0 %v317
    %365 = vmatprep.subr.mxu0 %v314
    %366 = vmatpush1.msra.mxu0 %v313
    %367 = vmatprep.subr.mxu0 %v310
    %368 = vmatpush1.msra.mxu0 %v309
    %369 = vmatprep.subr.mxu0 %v306
    %370 = vmatpush1.msra.mxu0 %v305
    %371 = vmatprep.subr.mxu0 %v302
    %372 = vmatpush1.msra.mxu0 %v301
    %373 = vmatprep.subr.mxu0 %v298
    %374 = vmatpush1.msra.mxu0 %v297
    %375 = vmatprep.subr.mxu0 %v294
    %376 = vmatpush1.msra.mxu0 %v293
    %377 = vmatprep.subr.mxu0 %v290
    %378 = vmatpush1.msra.mxu0 %v289
    %379 = vmatprep.subr.mxu0 0.0
    %380 = vmatpush2.msra.mxu0 0.0
    %381 = vmatprep.subr.mxu0 0.0
    %382 = vmatpush2.msra.mxu0 0.0
    %383 = vmatprep.subr.mxu0 0.0
    %384 = vmatpush2.msra.mxu0 0.0
    %385 = vmatprep.subr.mxu0 0.0
    %386 = vmatpush2.msra.mxu0 0.0
    %387 = vmatprep.subr.mxu0 0.0
    %388 = vmatpush2.msra.mxu0 0.0
    %389 = vmatprep.subr.mxu0 0.0
    %390 = vmatpush2.msra.mxu0 0.0
    %391 = vmatprep.subr.mxu0 0.0
    %392 = vmatpush2.msra.mxu0 0.0
    %393 = vmatprep.subr.mxu0 0.0
    %394 = vmatpush2.msra.mxu0 0.0
    %395 = vmatprep.subr.mxu0 0.0
    %396 = vmatpush2.msra.mxu0 0.0
    %397 = vmatprep.subr.mxu0 0.0
    %398 = vmatpush2.msra.mxu0 0.0
    %399 = vmatprep.subr.mxu0 0.0
    %400 = vmatpush2.msra.mxu0 0.0
    %401 = vmatprep.subr.mxu0 0.0
    %402 = vmatpush2.msra.mxu0 0.0
    %403 = vmatprep.subr.mxu0 0.0
    %404 = vmatpush2.msra.mxu0 0.0
    %405 = vmatprep.subr.mxu0 0.0
    %406 = vmatpush2.msra.mxu0 0.0
    %407 = vmatprep.subr.mxu0 0.0
    %408 = vmatpush2.msra.mxu0 0.0
    %409 = vmatprep.subr.mxu0 0.0
    %410 = vmatpush2.msra.mxu0 0.0
    %411 = vmatprep.mubr.f32.mxu0 0.0
    %412 = vmatmul.mubr.f32.gmra.mxu0 %v345
    %v413 = vpop.f32.mrf.mxu0
    %v414 = vadd.f32 %v326, %v413
    %v415 = vpop.f32.mrf.mxu0
    %v416 = vadd.f32 %v330, %v415
    %417 = vdwg.mxu0
    %418 = vmatprep.subr.mxu0 0.0
    %419 = vmatpush1.msra.mxu0 0.0
    %420 = vmatprep.subr.mxu0 0.0
    %421 = vmatpush1.msra.mxu0 0.0
    %422 = vmatprep.subr.mxu0 0.0
    %423 = vmatpush1.msra.mxu0 0.0
    %424 = vmatprep.subr.mxu0 0.0
    %425 = vmatpush1.msra.mxu0 0.0
    %426 = vmatprep.subr.mxu0 0.0
    %427 = vmatpush1.msra.mxu0 0.0
    %428 = vmatprep.subr.mxu0 0.0
    %429 = vmatpush1.msra.mxu0 0.0
    %430 = vmatprep.subr.mxu0 0.0
    %431 = vmatpush1.msra.mxu0 0.0
    %432 = vmatprep.subr.mxu0 0.0
    %433 = vmatpush1.msra.mxu0 0.0
    %434 = vmatprep.subr.mxu0 %v320
    %435 = vmatpush1.msra.mxu0 %v319
    %436 = vmatprep.subr.mxu0 %v316
    %437 = vmatpush1.msra.mxu0 %v315
    %438 = vmatprep.subr.mxu0 %v312
    %439 = vmatpush1.msra.mxu0 %v311
    %440 = vmatprep.subr.mxu0 %v308
    %441 = vmatpush1.msra.mxu0 %v307
    %442 = vmatprep.subr.mxu0 %v304
    %443 = vmatpush1.msra.mxu0 %v303
    %444 = vmatprep.subr.mxu0 %v300
    %445 = vmatpush1.msra.mxu0 %v299
    %446 = vmatprep.subr.mxu0 %v296
    %447 = vmatpush1.msra.mxu0 %v295
    %448 = vmatprep.subr.mxu0 %v292
    %449 = vmatpush1.msra.mxu0 %v291
    %450 = vmatprep.subr.mxu0 0.0
    %451 = vmatpush2.msra.mxu0 0.0
    %452 = vmatprep.subr.mxu0 0.0
    %453 = vmatpush2.msra.mxu0 0.0
    %454 = vmatprep.subr.mxu0 0.0
    %455 = vmatpush2.msra.mxu0 0.0
    %456 = vmatprep.subr.mxu0 0.0
    %457 = vmatpush2.msra.mxu0 0.0
    %458 = vmatprep.subr.mxu0 0.0
    %459 = vmatpush2.msra.mxu0 0.0
    %460 = vmatprep.subr.mxu0 0.0
    %461 = vmatpush2.msra.mxu0 0.0
    %462 = vmatprep.subr.mxu0 0.0
    %463 = vmatpush2.msra.mxu0 0.0
    %464 = vmatprep.subr.mxu0 0.0
    %465 = vmatpush2.msra.mxu0 0.0
    %466 = vmatprep.subr.mxu0 0.0
    %467 = vmatpush2.msra.mxu0 0.0
    %468 = vmatprep.subr.mxu0 0.0
    %469 = vmatpush2.msra.mxu0 0.0
    %470 = vmatprep.subr.mxu0 0.0
    %471 = vmatpush2.msra.mxu0 0.0
    %472 = vmatprep.subr.mxu0 0.0
    %473 = vmatpush2.msra.mxu0 0.0
    %474 = vmatprep.subr.mxu0 0.0
    %475 = vmatpush2.msra.mxu0 0.0
    %476 = vmatprep.subr.mxu0 0.0
    %477 = vmatpush2.msra.mxu0 0.0
    %478 = vmatprep.subr.mxu0 0.0
    %479 = vmatpush2.msra.mxu0 0.0
    %480 = vmatprep.subr.mxu0 0.0
    %481 = vmatpush2.msra.mxu0 0.0
    %482 = vmatprep.mubr.f32.mxu0 0.0
    %483 = vmatmul.mubr.f32.gmra.mxu0 %v345
    %v484 = vpop.f32.mrf.mxu0
    %v485 = vadd.f32 %v334, %v484
    %v486 = vpop.f32.mrf.mxu0
    %v487 = vadd.f32 %v338, %v486
    %488 = vdwg.mxu0
    %v489 = vmax.f32 %v414, 0.0
    %v490 = vmax.f32 %v416, 0.0
    %v491 = vmax.f32 %v485, 0.0
    %v492 = vmax.f32 %v487, 0.0
    %v493 = vld [vmem:[#allocation10] sm:$0xff]
    %v494 = vld [vmem:[#allocation10 + $0x8] sm:$0xff]
    %v495 = vld [vmem:[#allocation10 + $0x10] sm:$0xff]
    %v496 = vld [vmem:[#allocation10 + $0x18] sm:$0xff]
    %v497 = vld [vmem:[#allocation10 + $0x20] sm:$0xff]
    %v498 = vld [vmem:[#allocation10 + $0x28] sm:$0xff]
    %v499 = vld [vmem:[#allocation10 + $0x30] sm:$0xff]
    %v500 = vld [vmem:[#allocation10 + $0x38] sm:$0xff]
    %v501 = vld [vmem:[#allocation10 + $0x40] sm:$0xff]
    %v502 = vld [vmem:[#allocation10 + $0x48] sm:$0xff]
    %v503 = vld [vmem:[#allocation10 + $0x50] sm:$0xff]
    %v504 = vld [vmem:[#allocation10 + $0x58] sm:$0xff]
    %v505 = vld [vmem:[#allocation10 + $0x60] sm:$0xff]
    %v506 = vld [vmem:[#allocation10 + $0x68] sm:$0xff]
    %v507 = vld [vmem:[#allocation10 + $0x70] sm:$0xff]
    %v508 = vld [vmem:[#allocation10 + $0x78] sm:$0xff]
    %v509 = vld [vmem:[#allocation10 + $0x80] sm:$0xff]
    %v510 = vld [vmem:[#allocation10 + $0x88] sm:$0xff]
    %v511 = vld [vmem:[#allocation10 + $0x90] sm:$0xff]
    %v512 = vld [vmem:[#allocation10 + $0x98] sm:$0xff]
    %v513 = vld [vmem:[#allocation10 + $0xa0] sm:$0xff]
    %v514 = vld [vmem:[#allocation10 + $0xa8] sm:$0xff]
    %v515 = vld [vmem:[#allocation10 + $0xb0] sm:$0xff]
    %v516 = vld [vmem:[#allocation10 + $0xb8] sm:$0xff]
    %v517 = vld [vmem:[#allocation10 + $0xc0] sm:$0xff]
    %v518 = vld [vmem:[#allocation10 + $0xc8] sm:$0xff]
    %v519 = vld [vmem:[#allocation10 + $0xd0] sm:$0xff]
    %v520 = vld [vmem:[#allocation10 + $0xd8] sm:$0xff]
    %v521 = vld [vmem:[#allocation10 + $0xe0] sm:$0xff]
    %v522 = vld [vmem:[#allocation10 + $0xe8] sm:$0xff]
    %v523 = vld [vmem:[#allocation10 + $0xf0] sm:$0xff]
    %v524 = vld [vmem:[#allocation10 + $0xf8] sm:$0xff]
    %v525 = vld [vmem:[#allocation10 + $0x100] sm:$0xff]
    %v526 = vld [vmem:[#allocation10 + $0x108] sm:$0xff]
    %v527 = vld [vmem:[#allocation10 + $0x110] sm:$0xff]
    %v528 = vld [vmem:[#allocation10 + $0x118] sm:$0xff]
    %v529 = vld [vmem:[#allocation10 + $0x120] sm:$0xff]
    %v530 = vld [vmem:[#allocation10 + $0x128] sm:$0xff]
    %v531 = vld [vmem:[#allocation10 + $0x130] sm:$0xff]
    %v532 = vld [vmem:[#allocation10 + $0x138] sm:$0xff]
    %v533 = vld [vmem:[#allocation10 + $0x140] sm:$0xff]
    %v534 = vld [vmem:[#allocation10 + $0x148] sm:$0xff]
    %v535 = vld [vmem:[#allocation10 + $0x150] sm:$0xff]
    %v536 = vld [vmem:[#allocation10 + $0x158] sm:$0xff]
    %v537 = vld [vmem:[#allocation10 + $0x160] sm:$0xff]
    %v538 = vld [vmem:[#allocation10 + $0x168] sm:$0xff]
    %v539 = vld [vmem:[#allocation10 + $0x170] sm:$0xff]
    %v540 = vld [vmem:[#allocation10 + $0x178] sm:$0xff]
    %v541 = vld [vmem:[#allocation10 + $0x180] sm:$0xff]
    %v542 = vld [vmem:[#allocation10 + $0x188] sm:$0xff]
    %v543 = vld [vmem:[#allocation10 + $0x190] sm:$0xff]
    %v544 = vld [vmem:[#allocation10 + $0x198] sm:$0xff]
    %v545 = vld [vmem:[#allocation10 + $0x1a0] sm:$0xff]
    %v546 = vld [vmem:[#allocation10 + $0x1a8] sm:$0xff]
    %v547 = vld [vmem:[#allocation10 + $0x1b0] sm:$0xff]
    %v548 = vld [vmem:[#allocation10 + $0x1b8] sm:$0xff]
    %v549 = vld [vmem:[#allocation10 + $0x1c0] sm:$0xff]
    %v550 = vld [vmem:[#allocation10 + $0x1c8] sm:$0xff]
    %v551 = vld [vmem:[#allocation10 + $0x1d0] sm:$0xff]
    %v552 = vld [vmem:[#allocation10 + $0x1d8] sm:$0xff]
    %v553 = vld [vmem:[#allocation10 + $0x1e0] sm:$0xff]
    %v554 = vld [vmem:[#allocation10 + $0x1e8] sm:$0xff]
    %v555 = vld [vmem:[#allocation10 + $0x1f0] sm:$0xff]
    %v556 = vld [vmem:[#allocation10 + $0x1f8] sm:$0xff]
    %v557 = vld [vmem:[#allocation10 + $0x200] sm:$0xff]
    %v558 = vld [vmem:[#allocation10 + $0x208] sm:$0xff]
    %v559 = vld [vmem:[#allocation10 + $0x210] sm:$0xff]
    %v560 = vld [vmem:[#allocation10 + $0x218] sm:$0xff]
    %v561 = vld [vmem:[#allocation10 + $0x220] sm:$0xff]
    %v562 = vld [vmem:[#allocation10 + $0x228] sm:$0xff]
    %v563 = vld [vmem:[#allocation10 + $0x230] sm:$0xff]
    %v564 = vld [vmem:[#allocation10 + $0x238] sm:$0xff]
    %v565 = vld [vmem:[#allocation10 + $0x240] sm:$0xff]
    %v566 = vld [vmem:[#allocation10 + $0x248] sm:$0xff]
    %v567 = vld [vmem:[#allocation10 + $0x250] sm:$0xff]
    %v568 = vld [vmem:[#allocation10 + $0x258] sm:$0xff]
    %v569 = vld [vmem:[#allocation10 + $0x260] sm:$0xff]
    %v570 = vld [vmem:[#allocation10 + $0x268] sm:$0xff]
    %v571 = vld [vmem:[#allocation10 + $0x270] sm:$0xff]
    %v572 = vld [vmem:[#allocation10 + $0x278] sm:$0xff]
    %v573 = vld [vmem:[#allocation10 + $0x280] sm:$0xff]
    %v574 = vld [vmem:[#allocation10 + $0x288] sm:$0xff]
    %v575 = vld [vmem:[#allocation10 + $0x290] sm:$0xff]
    %v576 = vld [vmem:[#allocation10 + $0x298] sm:$0xff]
    %v577 = vld [vmem:[#allocation10 + $0x2a0] sm:$0xff]
    %v578 = vld [vmem:[#allocation10 + $0x2a8] sm:$0xff]
    %v579 = vld [vmem:[#allocation10 + $0x2b0] sm:$0xff]
    %v580 = vld [vmem:[#allocation10 + $0x2b8] sm:$0xff]
    %v581 = vld [vmem:[#allocation10 + $0x2c0] sm:$0xff]
    %v582 = vld [vmem:[#allocation10 + $0x2c8] sm:$0xff]
    %v583 = vld [vmem:[#allocation10 + $0x2d0] sm:$0xff]
    %v584 = vld [vmem:[#allocation10 + $0x2d8] sm:$0xff]
    %v585 = vld [vmem:[#allocation10 + $0x2e0] sm:$0xff]
    %v586 = vld [vmem:[#allocation10 + $0x2e8] sm:$0xff]
    %v587 = vld [vmem:[#allocation10 + $0x2f0] sm:$0xff]
    %v588 = vld [vmem:[#allocation10 + $0x2f8] sm:$0xff]
    %v589 = vld [vmem:[#allocation10 + $0x300] sm:$0xff]
    %v590 = vld [vmem:[#allocation10 + $0x308] sm:$0xff]
    %v591 = vld [vmem:[#allocation10 + $0x310] sm:$0xff]
    %v592 = vld [vmem:[#allocation10 + $0x318] sm:$0xff]
    %v593 = vld [vmem:[#allocation10 + $0x320] sm:$0xff]
    %v594 = vld [vmem:[#allocation10 + $0x328] sm:$0xff]
    %v595 = vld [vmem:[#allocation10 + $0x330] sm:$0xff]
    %v596 = vld [vmem:[#allocation10 + $0x338] sm:$0xff]
    %v597 = vld [vmem:[#allocation10 + $0x340] sm:$0xff]
    %v598 = vld [vmem:[#allocation10 + $0x348] sm:$0xff]
    %v599 = vld [vmem:[#allocation10 + $0x350] sm:$0xff]
    %v600 = vld [vmem:[#allocation10 + $0x358] sm:$0xff]
    %v601 = vld [vmem:[#allocation10 + $0x360] sm:$0xff]
    %v602 = vld [vmem:[#allocation10 + $0x368] sm:$0xff]
    %v603 = vld [vmem:[#allocation10 + $0x370] sm:$0xff]
    %v604 = vld [vmem:[#allocation10 + $0x378] sm:$0xff]
    %v605 = vld [vmem:[#allocation10 + $0x380] sm:$0xff]
    %v606 = vld [vmem:[#allocation10 + $0x388] sm:$0xff]
    %v607 = vld [vmem:[#allocation10 + $0x390] sm:$0xff]
    %v608 = vld [vmem:[#allocation10 + $0x398] sm:$0xff]
    %v609 = vld [vmem:[#allocation10 + $0x3a0] sm:$0xff]
    %v610 = vld [vmem:[#allocation10 + $0x3a8] sm:$0xff]
    %v611 = vld [vmem:[#allocation10 + $0x3b0] sm:$0xff]
    %v612 = vld [vmem:[#allocation10 + $0x3b8] sm:$0xff]
    %v613 = vld [vmem:[#allocation10 + $0x3c0] sm:$0xff]
    %v614 = vld [vmem:[#allocation10 + $0x3c8] sm:$0xff]
    %v615 = vld [vmem:[#allocation10 + $0x3d0] sm:$0xff]
    %v616 = vld [vmem:[#allocation10 + $0x3d8] sm:$0xff]
    %v617 = vld [vmem:[#allocation10 + $0x3e0] sm:$0xff]
    %v618 = vld [vmem:[#allocation10 + $0x3e8] sm:$0xff]
    %v619 = vld [vmem:[#allocation10 + $0x3f0] sm:$0xff]
    %v620 = vld [vmem:[#allocation10 + $0x3f8] sm:$0xff]
    %v621 = vld [vmem:[#allocation12] sm:$0x3]
    %v623 = vlaneseq
    %v624 = vshrl.u32 %v623, 7
    %v625 = vsub.s32 0, %v624
    %v626 = vrot.slane %v621, %v625
    %v627 = vlaneseq
    %v628 = vshrl.u32 %v627, 7
    %v629 = vsub.s32 1, %v628
    %v630 = vrot.slane %v621, %v629
    %633 = vmatprep.subr.mxu0 %v524
    %634 = vmatpush1.msra.mxu0 %v523
    %635 = vmatprep.subr.mxu0 %v522
    %636 = vmatpush1.msra.mxu0 %v521
    %637 = vmatprep.subr.mxu0 %v520
    %638 = vmatpush1.msra.mxu0 %v519
    %639 = vmatprep.subr.mxu0 %v518
    %640 = vmatpush1.msra.mxu0 %v517
    %641 = vmatprep.subr.mxu0 %v516
    %642 = vmatpush1.msra.mxu0 %v515
    %643 = vmatprep.subr.mxu0 %v514
    %644 = vmatpush1.msra.mxu0 %v513
    %645 = vmatprep.subr.mxu0 %v512
    %646 = vmatpush1.msra.mxu0 %v511
    %647 = vmatprep.subr.mxu0 %v510
    %648 = vmatpush1.msra.mxu0 %v509
    %649 = vmatprep.subr.mxu0 %v508
    %650 = vmatpush1.msra.mxu0 %v507
    %651 = vmatprep.subr.mxu0 %v506
    %652 = vmatpush1.msra.mxu0 %v505
    %653 = vmatprep.subr.mxu0 %v504
    %654 = vmatpush1.msra.mxu0 %v503
    %655 = vmatprep.subr.mxu0 %v502
    %656 = vmatpush1.msra.mxu0 %v501
    %657 = vmatprep.subr.mxu0 %v500
    %658 = vmatpush1.msra.mxu0 %v499
    %659 = vmatprep.subr.mxu0 %v498
    %660 = vmatpush1.msra.mxu0 %v497
    %661 = vmatprep.subr.mxu0 %v496
    %662 = vmatpush1.msra.mxu0 %v495
    %663 = vmatprep.subr.mxu0 %v494
    %664 = vmatpush1.msra.mxu0 %v493
    %665 = vmatprep.subr.mxu0 %v556
    %666 = vmatpush2.msra.mxu0 %v555
    %667 = vmatprep.subr.mxu0 %v554
    %668 = vmatpush2.msra.mxu0 %v553
    %669 = vmatprep.subr.mxu0 %v552
    %670 = vmatpush2.msra.mxu0 %v551
    %671 = vmatprep.subr.mxu0 %v550
    %672 = vmatpush2.msra.mxu0 %v549
    %673 = vmatprep.subr.mxu0 %v548
    %674 = vmatpush2.msra.mxu0 %v547
    %675 = vmatprep.subr.mxu0 %v546
    %676 = vmatpush2.msra.mxu0 %v545
    %677 = vmatprep.subr.mxu0 %v544
    %678 = vmatpush2.msra.mxu0 %v543
    %679 = vmatprep.subr.mxu0 %v542
    %680 = vmatpush2.msra.mxu0 %v541
    %681 = vmatprep.subr.mxu0 %v540
    %682 = vmatpush2.msra.mxu0 %v539
    %683 = vmatprep.subr.mxu0 %v538
    %684 = vmatpush2.msra.mxu0 %v537
    %685 = vmatprep.subr.mxu0 %v536
    %686 = vmatpush2.msra.mxu0 %v535
    %687 = vmatprep.subr.mxu0 %v534
    %688 = vmatpush2.msra.mxu0 %v533
    %689 = vmatprep.subr.mxu0 %v532
    %690 = vmatpush2.msra.mxu0 %v531
    %691 = vmatprep.subr.mxu0 %v530
    %692 = vmatpush2.msra.mxu0 %v529
    %693 = vmatprep.subr.mxu0 %v528
    %694 = vmatpush2.msra.mxu0 %v527
    %695 = vmatprep.subr.mxu0 %v526
    %696 = vmatpush2.msra.mxu0 %v525
    %697 = vmatprep.mubr.f32.mxu0 %v490
    %698 = vmatmul.mubr.f32.gmra.mxu0 %v489
    %v699 = vpop.f32.mrf.mxu0
    %v700 = vadd.f32 %v626, %v699
    %v701 = vpop.f32.mrf.mxu0
    %v702 = vadd.f32 %v630, %v701
    %703 = vdwg.mxu0
    %704 = vmatprep.subr.mxu0 %v588
    %705 = vmatpush1.msra.mxu0 %v587
    %706 = vmatprep.subr.mxu0 %v586
    %707 = vmatpush1.msra.mxu0 %v585
    %708 = vmatprep.subr.mxu0 %v584
    %709 = vmatpush1.msra.mxu0 %v583
    %710 = vmatprep.subr.mxu0 %v582
    %711 = vmatpush1.msra.mxu0 %v581
    %712 = vmatprep.subr.mxu0 %v580
    %713 = vmatpush1.msra.mxu0 %v579
    %714 = vmatprep.subr.mxu0 %v578
    %715 = vmatpush1.msra.mxu0 %v577
    %716 = vmatprep.subr.mxu0 %v576
    %717 = vmatpush1.msra.mxu0 %v575
    %718 = vmatprep.subr.mxu0 %v574
    %719 = vmatpush1.msra.mxu0 %v573
    %720 = vmatprep.subr.mxu0 %v572
    %721 = vmatpush1.msra.mxu0 %v571
    %722 = vmatprep.subr.mxu0 %v570
    %723 = vmatpush1.msra.mxu0 %v569
    %724 = vmatprep.subr.mxu0 %v568
    %725 = vmatpush1.msra.mxu0 %v567
    %726 = vmatprep.subr.mxu0 %v566
    %727 = vmatpush1.msra.mxu0 %v565
    %728 = vmatprep.subr.mxu0 %v564
    %729 = vmatpush1.msra.mxu0 %v563
    %730 = vmatprep.subr.mxu0 %v562
    %731 = vmatpush1.msra.mxu0 %v561
    %732 = vmatprep.subr.mxu0 %v560
    %733 = vmatpush1.msra.mxu0 %v559
    %734 = vmatprep.subr.mxu0 %v558
    %735 = vmatpush1.msra.mxu0 %v557
    %736 = vmatprep.subr.mxu0 %v620
    %737 = vmatpush2.msra.mxu0 %v619
    %738 = vmatprep.subr.mxu0 %v618
    %739 = vmatpush2.msra.mxu0 %v617
    %740 = vmatprep.subr.mxu0 %v616
    %741 = vmatpush2.msra.mxu0 %v615
    %742 = vmatprep.subr.mxu0 %v614
    %743 = vmatpush2.msra.mxu0 %v613
    %744 = vmatprep.subr.mxu0 %v612
    %745 = vmatpush2.msra.mxu0 %v611
    %746 = vmatprep.subr.mxu0 %v610
    %747 = vmatpush2.msra.mxu0 %v609
    %748 = vmatprep.subr.mxu0 %v608
    %749 = vmatpush2.msra.mxu0 %v607
    %750 = vmatprep.subr.mxu0 %v606
    %751 = vmatpush2.msra.mxu0 %v605
    %752 = vmatprep.subr.mxu0 %v604
    %753 = vmatpush2.msra.mxu0 %v603
    %754 = vmatprep.subr.mxu0 %v602
    %755 = vmatpush2.msra.mxu0 %v601
    %756 = vmatprep.subr.mxu0 %v600
    %757 = vmatpush2.msra.mxu0 %v599
    %758 = vmatprep.subr.mxu0 %v598
    %759 = vmatpush2.msra.mxu0 %v597
    %760 = vmatprep.subr.mxu0 %v596
    %761 = vmatpush2.msra.mxu0 %v595
    %762 = vmatprep.subr.mxu0 %v594
    %763 = vmatpush2.msra.mxu0 %v593
    %764 = vmatprep.subr.mxu0 %v592
    %765 = vmatpush2.msra.mxu0 %v591
    %766 = vmatprep.subr.mxu0 %v590
    %767 = vmatpush2.msra.mxu0 %v589
    %768 = vmatprep.mubr.f32.mxu0 %v492
    %769 = vmatmul.mubr.f32.gmra.mxu0 %v491
    %v770 = vpop.f32.mrf.mxu0
    %v771 = vadd.f32 %v700, %v770
    %v772 = vpop.f32.mrf.mxu0
    %v773 = vadd.f32 %v702, %v772
    %774 = vdwg.mxu0
    %v775 = vxor.u32 %v771, 2147483648
    %v776 = vxor.u32 %v773, 2147483648
    %v777 = vmul.f32 %v775, 1.442695
    %v778 = vpow.pop %v777
    %v779 = vmul.f32 %v776, 1.442695
    %v780 = vpow.pop %v779
    %v781 = vadd.f32 %v778, 1.0
    %v782 = vadd.f32 %v780, 1.0
    %v783 = vrcp.pop %v781
    %v784 = vmul.f32 1.0, %v783
    %v785 = vrcp.pop %v782
    %v786 = vmul.f32 1.0, %v785
    %v789 = vcombine.low %v784, %v786
    %v791 = vunpack.c.l.s4 1983009808
    %v792 = vunpack.c.0.s8 %v791
    %v793 = vlaneseq
    %v794 = vshrl.u32 %v793, 7
    %v795 = vsub.s32 %v792, %v794
    %v796 = vrot.slane %v789, %v795
    %798 = vst [vmem:[%s9] sm:$0xf] %v796
    // Predicated region
    $region66: #{decoder_forward.1} parent=1 // pred_check
      _
    $region67: #{decoder_forward.1} parent=1 // pred_check_branch
      %800 = sbr.rel (0) target = $region69
    $region68: #{decoder_forward.1} parent=1 // pred_region
      _
    $region69: #{decoder_forward.1} parent=1 // pred_fallthru
      _
    // Predicated region
    $region70: #{decoder_forward.1} parent=1 // pred_check
      _
    $region71: #{decoder_forward.1} parent=1 // pred_check_branch
      %802 = sbr.rel (0) target = $region73
    $region72: #{decoder_forward.1} parent=1 // pred_region
      _
    $region73: #{decoder_forward.1} parent=1 // pred_fallthru
      _
    %803 = vsyncpa [#allocation3], 1
    %804 = vsyncpa [#allocation5], 1
    %805 = vsyncpa [#allocation8], 1
    %806 = vsyncpa [#allocation11], 1

</llo_original>
